<compile_context>
chip_gen: v7x
topology: tpu7x:2x2x1
jax: 0.10.0
libtpu: 0.0.40
codegen_flags: <defaults>
</compile_context>

<pallas_src>
import math
import functools

import jax
import jax.numpy as jnp
from jax.experimental import pallas as pl
from jax.experimental.pallas import tpu as pltpu

_LANE = 128


def _make_sinusoidal_pe(context_size: int, dims: int) -> jnp.ndarray:
    """Deterministic buffer setup, matches the torch __init__ `pe` (even `dims`)."""
    positions = jnp.arange(context_size, dtype=jnp.float32)[:, None]            # (S, 1)
    denominator = jnp.exp(
        jnp.arange(0, dims, 2, dtype=jnp.float32) * -(math.log(10000.0) / dims)
    )                                                                            # (D/2,)
    angles = positions * denominator                                             # (S, D/2)
    pe = jnp.zeros((context_size, dims), dtype=jnp.float32)
    pe = pe.at[:, 0::2].set(jnp.sin(angles))
    pe = pe.at[:, 1::2].set(jnp.cos(angles))
    return pe                                                                    # (S, D)


def _add_pe_kernel(x_ref, pe_ref, o_ref):
    # x_ref: (TB, TR, L), pe_ref: (1, TR, L) -- broadcast over the batch tile.
    o_ref[...] = (x_ref[...] + pe_ref[...]).astype(o_ref.dtype)


def _add_pe_dropout_kernel(x_ref, pe_ref, bits_ref, o_ref, *, keep_threshold, inv_keep):
    y = x_ref[...] + pe_ref[...]
    # keep iff uniform u32 < keep_prob * 2^32  (bias <= 2^-32, negligible)
    keep = bits_ref[...] < jnp.uint32(keep_threshold)
    o_ref[...] = jnp.where(keep, y * inv_keep, jnp.zeros_like(y)).astype(o_ref.dtype)


def _choose_tiles(B: int, R: int, lane: int, itemsize: int):
    """Pick (TB, TR) so one x buffer is ~1 MiB (VMEM-safe on v5e/v6e/v7x scoped defaults)."""
    target_rows = max(8, (1 << 20) // (lane * itemsize))
    if lane != _LANE:
        # fallback layout: block covers the full (S, D) dims (satisfies (8,128) rule).
        return 1, R
    if R <= target_rows:
        tr = R
        tb = max(1, min(B, target_rows // max(R, 1)))
    else:
        tr = (target_rows // 8) * 8
        tb = 1
    return tb, tr


def positional_embedding_forward(x: jnp.ndarray,
                                 pe_full: jnp.ndarray,
                                 *,
                                 dropout_p: float = 0.0,
                                 training: bool = False,
                                 rng_key=None) -> jnp.ndarray:
    """x: (B, S, D);  pe_full: (context_size, D)."""
    B, S, D = x.shape
    assert pe_full.shape[0] >= S and pe_full.shape[1] == D

    # ---- lane-dense flattening ------------------------------------------------------
    if (S * D) % _LANE == 0:
        R, lane = (S * D) // _LANE, _LANE
    else:
        # TODO(synk): non-128-divisible S*D falls back to full (S, D) blocks (masked stores).
        R, lane = S, D

    x_r = x.reshape(B, R, lane)
    pe_r = pe_full[:S, :].astype(x.dtype).reshape(1, R, lane)

    TB, TR = _choose_tiles(B, R, lane, jnp.dtype(x.dtype).itemsize)
    grid = (pl.cdiv(R, TR), pl.cdiv(B, TB))          # r OUTER -> pe block reused across b

    x_spec = pl.BlockSpec((TB, TR, lane), lambda r, b: (b, r, 0))
    pe_spec = pl.BlockSpec((1, TR, lane), lambda r, b: (0, r, 0))
    out_spec = pl.BlockSpec((TB, TR, lane), lambda r, b: (b, r, 0))

    use_dropout = training and dropout_p > 0.0
    if use_dropout:
        assert rng_key is not None, "training-mode dropout needs an rng_key"
        keep_prob = 1.0 - float(dropout_p)
        keep_threshold = min(int(keep_prob * 4294967296.0), 4294967295)
        bits = jax.random.bits(rng_key, shape=(B, R, lane), dtype=jnp.uint32)
        kernel = functools.partial(_add_pe_dropout_kernel,
                                   keep_threshold=keep_threshold,
                                   inv_keep=1.0 / keep_prob)
        in_specs = [x_spec, pe_spec, pl.BlockSpec((TB, TR, lane), lambda r, b: (b, r, 0))]
        args = (x_r, pe_r, bits)
    else:
        kernel = _add_pe_kernel
        in_specs = [x_spec, pe_spec]
        args = (x_r, pe_r)

    out = pl.pallas_call(
        kernel,
        out_shape=jax.ShapeDtypeStruct((B, R, lane), x.dtype),
        grid=grid,
        in_specs=in_specs,
        out_specs=out_spec,
        compiler_params=pltpu.CompilerParams(
            dimension_semantics=("parallel", "parallel"),
        ),
    )(*args)

    return out.reshape(B, S, D)


if __name__ == "__main__":
    # Small shapes consistent with the module: (B, S, D)
    B, S, D = 2, 8, 32
    context_size = 16
    dropout_val = 0.1

    key = jax.random.PRNGKey(0)
    kx, kd = jax.random.split(key)
    x = jax.random.normal(kx, (B, S, D), dtype=jnp.float32)
    pe_full = _make_sinusoidal_pe(context_size, D)

    # Eval-mode forward (dropout is identity) -- matches torch module in .eval()
    y = positional_embedding_forward(x, pe_full, dropout_p=dropout_val, training=False)
    y = jax.block_until_ready(y)

    ref = x + pe_full[None, :S, :]
    assert y.shape == x.shape
    assert jnp.allclose(y, ref, atol=1e-6), "mismatch vs reference (eval mode)"

    # Training-mode (dropout) path: every element is either 0 or (x+pe)/keep_prob.
    y_train = positional_embedding_forward(
        x, pe_full, dropout_p=dropout_val, training=True, rng_key=kd
    )
    y_train = jax.block_until_ready(y_train)
    assert y_train.shape == x.shape
    keep_prob = 1.0 - dropout_val
    scaled = ref / keep_prob
    ok = jnp.isclose(y_train, 0.0, atol=1e-6) | jnp.isclose(y_train, scaled, atol=1e-5)
    assert bool(jnp.all(ok)), "training-mode dropout output has unexpected values"

    print("KERNEL_OK")
</pallas_src>

<mosaic_0001>
module attributes {stable_mosaic.version = 11 : i64} {
  func.func @_add_pe_kernel(%arg0: i32, %arg1: i32, %arg2: memref<2x2x128xf32, #tpu.memory_space<vmem>>, %arg3: memref<1x2x128xf32, #tpu.memory_space<vmem>>, %arg4: memref<2x2x128xf32, #tpu.memory_space<vmem>>) attributes {dimension_semantics = [#tpu.dimension_semantics<parallel>, #tpu.dimension_semantics<parallel>], iteration_bounds = array<i64: 1, 1>, scalar_prefetch = 0 : i64, scratch_operands = 0 : i64, tpu.core_type = #tpu.core_type<tc>, window_params = [{transform_indices = @transform_0, window_bounds = array<i64: 2, 2, 128>}, {transform_indices = @transform_1, window_bounds = array<i64: 1, 2, 128>}, {transform_indices = @transform_2, window_bounds = array<i64: 2, 2, 128>}]} {
    %c0 = arith.constant 0 : index
    %c0_0 = arith.constant 0 : index
    %c0_1 = arith.constant 0 : index
    %0 = vector.load %arg2[%c0, %c0_0, %c0_1] : memref<2x2x128xf32, #tpu.memory_space<vmem>>, vector<2x2x128xf32>
    %c0_2 = arith.constant 0 : index
    %c0_3 = arith.constant 0 : index
    %c0_4 = arith.constant 0 : index
    %1 = vector.load %arg3[%c0_2, %c0_3, %c0_4] : memref<1x2x128xf32, #tpu.memory_space<vmem>>, vector<1x2x128xf32>
    %2 = vector.broadcast %1 : vector<1x2x128xf32> to vector<2x2x128xf32>
    %3 = arith.addf %0, %2 : vector<2x2x128xf32>
    %c0_5 = arith.constant 0 : index
    %c0_6 = arith.constant 0 : index
    %c0_7 = arith.constant 0 : index
    %4 = vector.load %arg4[%c0_5, %c0_6, %c0_7] : memref<2x2x128xf32, #tpu.memory_space<vmem>>, vector<2x2x128xf32>
    tpu.vector_store %arg4[%c0_5, %c0_6, %c0_7], %3 {strides = array<i32>} : memref<2x2x128xf32, #tpu.memory_space<vmem>>, vector<2x2x128xf32>,
    return
  }
  func.func @transform_0(%arg0: i32, %arg1: i32) -> (i32, i32, i32) {
    %c0_i32 = arith.constant 0 : i32
    %c0_i32_0 = arith.constant 0 : i32
    return %arg1, %arg0, %c0_i32 : i32, i32, i32
  }
  func.func @transform_1(%arg0: i32, %arg1: i32) -> (i32, i32, i32) {
    %c0_i32 = arith.constant 0 : i32
    %c0_i32_0 = arith.constant 0 : i32
    %c0_i32_1 = arith.constant 0 : i32
    return %c0_i32, %arg0, %c0_i32_0 : i32, i32, i32
  }
  func.func @transform_2(%arg0: i32, %arg1: i32) -> (i32, i32, i32) {
    %c0_i32 = arith.constant 0 : i32
    %c0_i32_0 = arith.constant 0 : i32
    return %arg1, %arg0, %c0_i32 : i32, i32, i32
  }
}

</mosaic_0001>

<llo_original>
// kernel: tpu_custom_call.1
$region0: #{tpu_custom_call.1}
  #allocation0 [shape = 'u32[]', space=smem, size = 0x4, offset = 0x4, fixed_abs, tag = 'smem constant byte address 0x4 - core index']
  #allocation1 [shape = 'u32[144,128]{1,0:T(1,128)}', space=vmem, size = 0x12000, scoped, tag = 'internal scratch']
  %s0 = inlined_call_operand.hbm [shape: f32[2,2,128], index: 0, kind: input, shape index: {}]
  %s1 = inlined_call_operand.vmem [shape: f32[1,2,128], index: 1, kind: input, shape index: {}]
  %s2 = inlined_call_operand.hbm [shape: f32[2,2,128], index: 2, kind: output, shape index: {}]
  %s3 = sld [smem:[#allocation0]]
  $region22: #{tpu_custom_call.1} parent=0
    _
  %s5 = ssub.s32 1, %s3
  %s6 = scalar_select 0, %s5, %s3
  $region1: #{tpu_custom_call.1} parent=0
    #allocation2 [shape = 'u8[2048]{0}', space=vmem, size = 0x800, scoped, tag = 'input window, operand 0, single buffered']
    #allocation3 [shape = 's32[1]{0}', space=sflag, size = 0x4, scoped, tag = 'scoped memory for tpu_custom_call.1']
    #allocation4 [shape = 's32[1]{0}', space=sflag, size = 0x4, scoped, tag = 'scoped memory for tpu_custom_call.1']
    #allocation5 [shape = 'u8[2048]{0}', space=vmem, size = 0x800, scoped, tag = 'output window, operand 0, single buffered']
    %7 = vsyncpa [#allocation3], 0
    %8 = vsyncpa [#allocation4], 0
    // Predicated region
    $region2: #{tpu_custom_call.1} parent=1 // pred_check
      _
    $region3: #{tpu_custom_call.1} parent=1 // pred_check_branch
      %10 = sbr.rel (0) target = $region5
    $region4: #{tpu_custom_call.1} parent=1 // pred_region
      %s12 = ssub.s32 64, 64
      %13 = vsyncadd [#allocation3], %s12
      %s14 = sshll.u32 [#allocation2], 4
      %s15 = int_to_ptr.vmem [resolvable:$true] %s14
      %20 = dma.hbm_to_vmem [thread:$0]  %s0, 64, %s15, [#allocation3], 32, 32, 2
    $region5: #{tpu_custom_call.1} parent=1 // pred_fallthru
      _
    // Predicated region
    $region6: #{tpu_custom_call.1} parent=1 // pred_check
      _
    $region7: #{tpu_custom_call.1} parent=1 // pred_check_branch
      %22 = sbr.rel (0) target = $region9
    $region8: #{tpu_custom_call.1} parent=1 // pred_region
      _
    $region9: #{tpu_custom_call.1} parent=1 // pred_fallthru
      _
    // Predicated region
    $region10: #{tpu_custom_call.1} parent=1 // pred_check
      _
    $region11: #{tpu_custom_call.1} parent=1 // pred_check_branch
      %24 = sbr.rel (0) target = $region13
    $region12: #{tpu_custom_call.1} parent=1 // pred_region
      %25 = dma.done [#allocation3], 64
    $region13: #{tpu_custom_call.1} parent=1 // pred_fallthru
      _
    %v26 = vld [vmem:[#allocation2] sm:$0x3]
    %v27 = vld [vmem:[#allocation2 + $0x2] sm:$0x3]
    %v28 = vld [vmem:[%s1] sm:$0x3]
    %v29 = vadd.f32 %v26, %v28
    %v30 = vadd.f32 %v27, %v28
    %31 = vst [vmem:[#allocation5] sm:$0x3] %v29
    %32 = vst [vmem:[#allocation5 + $0x2] sm:$0x3] %v30
    // Predicated region
    $region14: #{tpu_custom_call.1} parent=1 // pred_check
      _
    $region15: #{tpu_custom_call.1} parent=1 // pred_check_branch
      %34 = sbr.rel (0) target = $region17
    $region16: #{tpu_custom_call.1} parent=1 // pred_region
      %s36 = ssub.s32 64, 64
      %37 = vsyncadd [#allocation4], %s36
      %s38 = sshll.u32 [#allocation5], 4
      %s39 = int_to_ptr.vmem [resolvable:$true] %s38
      %44 = dma.vmem_to_hbm [thread:$0]  %s39, 64, %s2, [#allocation4], 32, 32, 2
    $region17: #{tpu_custom_call.1} parent=1 // pred_fallthru
      _
    // Predicated region
    $region18: #{tpu_custom_call.1} parent=1 // pred_check
      _
    $region19: #{tpu_custom_call.1} parent=1 // pred_check_branch
      %46 = sbr.rel (0) target = $region21
    $region20: #{tpu_custom_call.1} parent=1 // pred_region
      %47 = dma.done [#allocation4], 64
    $region21: #{tpu_custom_call.1} parent=1 // pred_fallthru
      _
    %48 = vsyncpa [#allocation3], 1
    %49 = vsyncpa [#allocation4], 1

</llo_original>
